<compile_context>
chip_gen: v6e
topology: v6e:2x2x1
jax: 0.10.0
libtpu: 0.0.40
codegen_flags: <defaults>
</compile_context>

<pallas_src>
import functools

import jax
import jax.numpy as jnp
from jax.experimental import pallas as pl
from jax.experimental.pallas import tpu as pltpu

IN_FEATURES = 8 * 8 * 12   # 768
H1 = 256
H2 = 128
OUT = 1

TM_DEFAULT = 2048          # batch tile: 2048*768*4B = 6 MiB f32 per x buffer


def _round_up(n, m):
    return ((n + m - 1) // m) * m


def chessnet_kernel(x_ref, w1_ref, b1_ref, w2_ref, b2_ref, w3_ref, b3_ref, o_ref):
    # Cast x f32 -> bf16 on the VPU; hidden under the MXU and avoids the extra
    # HBM pass a wrapper-side astype would cost.
    x_bf = x_ref[...].astype(jnp.bfloat16)

    # fc1 + bias + relu (bf16 MXU inputs, f32 accumulate), cast straight to
    # bf16 so only one copy of h1 stays live (VMEM scratch matters on v7x).
    h1 = jnp.dot(x_bf, w1_ref[...], preferred_element_type=jnp.float32)
    h1 = jnp.maximum(h1 + b1_ref[...], 0.0).astype(jnp.bfloat16)

    # fc2 + bias + relu (f32 epilogue on the VPU).
    h2 = jnp.dot(h1, w2_ref[...], preferred_element_type=jnp.float32)
    h2 = jnp.maximum(h2 + b2_ref[...], 0.0)

    # fc3 + tanh: N=1 output -> VPU multiply + XLU lane reduction instead of
    # lighting up a single MXU column.  w3_ref is a (1, H2) f32 row.
    h3 = jnp.sum(h2 * w3_ref[...], axis=-1, keepdims=True) + b3_ref[...]
    # TODO(synk): if xprof shows the (tm, 1) strided writeback exposed, switch
    # to a lane-dense (1, tm) output layout and reshape in the wrapper.
    o_ref[...] = jnp.tanh(h3).astype(o_ref.dtype)


@functools.partial(jax.jit, static_argnames=("tm",))
def chessnet_forward(x, w1, b1, w2, b2, w3, b3, *, tm=TM_DEFAULT):
    """x: (B, 768) f32.  w*: (in, out) f32, b*: (1, out) f32.  Returns (B, 1) f32."""
    B = x.shape[0]

    # Batch tile: no larger than the batch, clamped to a multiple of 8
    # (sublane constraint).  Ragged last tile handled by Pallas write-masking.
    tm = max(8, _round_up(min(tm, B), 8))
    grid = (pl.cdiv(B, tm),)

    # Weights to bf16 for the MXU (tiny, stays on-chip afterwards); biases and
    # the fc3 row stay f32 for the VPU epilogues.
    w1_bf = w1.astype(jnp.bfloat16)
    w2_bf = w2.astype(jnp.bfloat16)
    w3_row = w3.T.astype(jnp.float32)            # (1, H2) row for the VPU path

    resident = lambda i: (0, 0)                  # weights/biases: fetched once

    bytes_accessed = (
        x.size * 4                               # x streamed once, f32
        + w1_bf.size * 2 + w2_bf.size * 2
        + (b1.size + b2.size + w3_row.size + b3.size) * 4
        + B * OUT * 4
    )
    cost = pl.CostEstimate(
        flops=2 * B * (IN_FEATURES * H1 + H1 * H2 + H2),
        transcendentals=B,                       # tanh per row
        bytes_accessed=bytes_accessed,
    )

    out = pl.pallas_call(
        chessnet_kernel,
        out_shape=jax.ShapeDtypeStruct((B, OUT), jnp.float32),
        grid_spec=pltpu.PrefetchScalarGridSpec(
            num_scalar_prefetch=0,
            grid=grid,
            in_specs=[
                # x: streamed f32 batch tiles, default double-buffering.
                # (Single streamed operand + HBM-bound: deeper pipelining
                # would only burn VMEM, so Buffered(>2) is intentionally not
                # used.)
                pl.BlockSpec((tm, IN_FEATURES), lambda i: (i, 0)),
                pl.BlockSpec((IN_FEATURES, H1), resident),   # w1 (bf16)
                pl.BlockSpec((1, H1), resident),             # b1 (f32)
                pl.BlockSpec((H1, H2), resident),            # w2 (bf16)
                pl.BlockSpec((1, H2), resident),             # b2 (f32)
                pl.BlockSpec((1, H2), resident),             # w3 row (f32)
                pl.BlockSpec((1, OUT), resident),            # b3 (f32)
            ],
            out_specs=pl.BlockSpec((tm, OUT), lambda i: (i, 0)),
        ),
        compiler_params=pltpu.CompilerParams(
            # Batch axis is embarrassingly parallel: shards across the two
            # TensorCores on v7x; harmless on single-TC v5e/v6e.
            # TODO(synk): if xprof shows one v7x TC idle, switch the axis to
            # pltpu.CORE_PARALLEL.
            dimension_semantics=("parallel",),
            # Working set at tm=2048: 2x6 MiB f32 x buffers + ~8 MiB
            # intermediates (x_bf16, h1 f32/bf16, h2 f32) + 0.5 MiB resident
            # weights ~= 24 MiB.  40 MiB leaves headroom and is safe on every
            # generation (v7x physical per-TC VMEM is 64 MiB).
            vmem_limit_bytes=40 * 1024 * 1024,
        ),
        cost_estimate=cost,
    )(x, w1_bf, b1, w2_bf, b2, w3_row, b3)

    return out


def init_params(key):
    """Deterministic init mimicking PyTorch's default Linear init
    (U(-1/sqrt(fan_in), 1/sqrt(fan_in)))."""
    ks = jax.random.split(key, 6)

    def lin(kw, kb, fan_in, fan_out):
        bound = 1.0 / jnp.sqrt(fan_in)
        w = jax.random.uniform(kw, (fan_in, fan_out), jnp.float32, -bound, bound)
        b = jax.random.uniform(kb, (1, fan_out), jnp.float32, -bound, bound)
        return w, b

    w1, b1 = lin(ks[0], ks[1], IN_FEATURES, H1)
    w2, b2 = lin(ks[2], ks[3], H1, H2)
    w3, b3 = lin(ks[4], ks[5], H2, OUT)
    return w1, b1, w2, b2, w3, b3


if __name__ == "__main__":
    key = jax.random.PRNGKey(0)
    k_x, k_p = jax.random.split(key)

    # Deliberately non-multiple-of-8 batch to exercise the ragged last tile
    # (out-of-bounds rows are computed but their writes are masked).
    B = 13
    x = jax.random.uniform(k_x, (B, IN_FEATURES), jnp.float32)

    params = init_params(k_p)
    w1, b1, w2, b2, w3, b3 = params

    # Reference in plain f32 JAX (same math, same params).  Tolerance is
    # loosened because the kernel uses bf16 MXU inputs with f32 accumulation.
    ref = jnp.tanh(jnp.maximum(jnp.maximum(x @ w1 + b1, 0.0) @ w2 + b2, 0.0) @ w3 + b3)

    # 1) Default tile: single ragged block (tm rounds up to 16 > B).
    out = jax.block_until_ready(chessnet_forward(x, *params))
    assert out.shape == (B, OUT)
    assert jnp.allclose(out, ref, atol=2e-2, rtol=2e-2), (
        f"max abs err {jnp.max(jnp.abs(out - ref))}")

    # 2) Multi-tile grid with a ragged final block (tm=8 -> grid=(2,)).
    out2 = jax.block_until_ready(chessnet_forward(x, *params, tm=8))
    assert out2.shape == (B, OUT)
    assert jnp.allclose(out2, ref, atol=2e-2, rtol=2e-2), (
        f"max abs err {jnp.max(jnp.abs(out2 - ref))}")

    print("KERNEL_OK")
</pallas_src>

<mosaic_0001>
module attributes {stable_mosaic.version = 11 : i64} {
  func.func @chessnet_kernel(%arg0: i32, %arg1: memref<16x768xf32, #tpu.memory_space<vmem>>, %arg2: memref<768x256xbf16, #tpu.memory_space<vmem>>, %arg3: memref<1x256xf32, #tpu.memory_space<vmem>>, %arg4: memref<256x128xbf16, #tpu.memory_space<vmem>>, %arg5: memref<1x128xf32, #tpu.memory_space<vmem>>, %arg6: memref<1x128xf32, #tpu.memory_space<vmem>>, %arg7: memref<1x1xf32, #tpu.memory_space<vmem>>, %arg8: memref<16x1xf32, #tpu.memory_space<vmem>>) attributes {dimension_semantics = [#tpu.dimension_semantics<parallel>], iteration_bounds = array<i64: 1>, scalar_prefetch = 0 : i64, scratch_operands = 0 : i64, tpu.core_type = #tpu.core_type<tc>, window_params = [{transform_indices = @transform_0, window_bounds = array<i64: 16, 768>}, {pipeline_mode = #tpu.pipeline_mode<synchronous>, transform_indices = @transform_1, window_bounds = array<i64: 768, 256>}, {pipeline_mode = #tpu.pipeline_mode<synchronous>, transform_indices = @transform_2, window_bounds = array<i64: 1, 256>}, {pipeline_mode = #tpu.pipeline_mode<synchronous>, transform_indices = @transform_3, window_bounds = array<i64: 256, 128>}, {pipeline_mode = #tpu.pipeline_mode<synchronous>, transform_indices = @transform_4, window_bounds = array<i64: 1, 128>}, {pipeline_mode = #tpu.pipeline_mode<synchronous>, transform_indices = @transform_5, window_bounds = array<i64: 1, 128>}, {pipeline_mode = #tpu.pipeline_mode<synchronous>, transform_indices = @transform_6, window_bounds = array<i64: 1, 1>}, {transform_indices = @transform_7, window_bounds = array<i64: 16, 1>}]} {
    %c0 = arith.constant 0 : index
    %c0_0 = arith.constant 0 : index
    %0 = vector.load %arg1[%c0, %c0_0] : memref<16x768xf32, #tpu.memory_space<vmem>>, vector<16x768xf32>
    %1 = arith.truncf %0 : vector<16x768xf32> to vector<16x768xbf16>
    %c0_1 = arith.constant 0 : index
    %c0_2 = arith.constant 0 : index
    %2 = vector.load %arg2[%c0_1, %c0_2] : memref<768x256xbf16, #tpu.memory_space<vmem>>, vector<768x256xbf16>
    %cst = arith.constant dense<0.000000e+00> : vector<16x256xf32>
    %3 = tpu.matmul %1, %2, %cst {dimension_numbers = #tpu.dot_dimension_numbers<[1], [0], [0], [1], [0, 0, 1, 1], [], []>} : vector<16x768xbf16>, vector<768x256xbf16>, vector<16x256xf32> -> vector<16x256xf32>
    %c0_3 = arith.constant 0 : index
    %c0_4 = arith.constant 0 : index
    %4 = vector.load %arg3[%c0_3, %c0_4] : memref<1x256xf32, #tpu.memory_space<vmem>>, vector<1x256xf32>
    %5 = vector.broadcast %4 : vector<1x256xf32> to vector<16x256xf32>
    %6 = arith.addf %3, %5 : vector<16x256xf32>
    %cst_5 = arith.constant 0.000000e+00 : f32
    %7 = vector.broadcast %cst_5 : f32 to vector<16x256xf32>
    %8 = arith.maximumf %6, %7 : vector<16x256xf32>
    %9 = arith.truncf %8 : vector<16x256xf32> to vector<16x256xbf16>
    %c0_6 = arith.constant 0 : index
    %c0_7 = arith.constant 0 : index
    %10 = vector.load %arg4[%c0_6, %c0_7] : memref<256x128xbf16, #tpu.memory_space<vmem>>, vector<256x128xbf16>
    %cst_8 = arith.constant dense<0.000000e+00> : vector<16x128xf32>
    %11 = tpu.matmul %9, %10, %cst_8 {dimension_numbers = #tpu.dot_dimension_numbers<[1], [0], [0], [1], [0, 0, 1, 1], [], []>} : vector<16x256xbf16>, vector<256x128xbf16>, vector<16x128xf32> -> vector<16x128xf32>
    %c0_9 = arith.constant 0 : index
    %c0_10 = arith.constant 0 : index
    %12 = vector.load %arg5[%c0_9, %c0_10] : memref<1x128xf32, #tpu.memory_space<vmem>>, vector<1x128xf32>
    %13 = vector.broadcast %12 : vector<1x128xf32> to vector<16x128xf32>
    %14 = arith.addf %11, %13 : vector<16x128xf32>
    %cst_11 = arith.constant 0.000000e+00 : f32
    %15 = vector.broadcast %cst_11 : f32 to vector<16x128xf32>
    %16 = arith.maximumf %14, %15 : vector<16x128xf32>
    %c0_12 = arith.constant 0 : index
    %c0_13 = arith.constant 0 : index
    %17 = vector.load %arg6[%c0_12, %c0_13] : memref<1x128xf32, #tpu.memory_space<vmem>>, vector<1x128xf32>
    %18 = vector.broadcast %17 : vector<1x128xf32> to vector<16x128xf32>
    %19 = arith.mulf %16, %18 : vector<16x128xf32>
    %cst_14 = arith.constant dense<0.000000e+00> : vector<16xf32>
    %20 = vector.multi_reduction <add>, %19, %cst_14 [1] : vector<16x128xf32> to vector<16xf32>
    %21 = vector.shape_cast %20 : vector<16xf32> to vector<16x1xf32>
    %c0_15 = arith.constant 0 : index
    %c0_16 = arith.constant 0 : index
    %22 = vector.load %arg7[%c0_15, %c0_16] : memref<1x1xf32, #tpu.memory_space<vmem>>, vector<1x1xf32>
    %23 = vector.broadcast %22 : vector<1x1xf32> to vector<16x1xf32>
    %24 = arith.addf %21, %23 : vector<16x1xf32>
    %25 = math.tanh %24 : vector<16x1xf32>
    %c0_17 = arith.constant 0 : index
    %c0_18 = arith.constant 0 : index
    %26 = vector.load %arg8[%c0_17, %c0_18] : memref<16x1xf32, #tpu.memory_space<vmem>>, vector<16x1xf32>
    tpu.vector_store %arg8[%c0_17, %c0_18], %25 {strides = array<i32>} : memref<16x1xf32, #tpu.memory_space<vmem>>, vector<16x1xf32>,
    return
  }
  func.func @transform_0(%arg0: i32) -> (i32, i32) {
    %c0_i32 = arith.constant 0 : i32
    %c0_i32_0 = arith.constant 0 : i32
    return %arg0, %c0_i32 : i32, i32
  }
  func.func @transform_1(%arg0: i32) -> (i32, i32) {
    %c0_i32 = arith.constant 0 : i32
    %c0_i32_0 = arith.constant 0 : i32
    %c0_i32_1 = arith.constant 0 : i32
    return %c0_i32, %c0_i32_0 : i32, i32
  }
  func.func @transform_2(%arg0: i32) -> (i32, i32) {
    %c0_i32 = arith.constant 0 : i32
    %c0_i32_0 = arith.constant 0 : i32
    %c0_i32_1 = arith.constant 0 : i32
    return %c0_i32, %c0_i32_0 : i32, i32
  }
  func.func @transform_3(%arg0: i32) -> (i32, i32) {
    %c0_i32 = arith.constant 0 : i32
    %c0_i32_0 = arith.constant 0 : i32
    %c0_i32_1 = arith.constant 0 : i32
    return %c0_i32, %c0_i32_0 : i32, i32
  }
  func.func @transform_4(%arg0: i32) -> (i32, i32) {
    %c0_i32 = arith.constant 0 : i32
    %c0_i32_0 = arith.constant 0 : i32
    %c0_i32_1 = arith.constant 0 : i32
    return %c0_i32, %c0_i32_0 : i32, i32
  }
  func.func @transform_5(%arg0: i32) -> (i32, i32) {
    %c0_i32 = arith.constant 0 : i32
    %c0_i32_0 = arith.constant 0 : i32
    %c0_i32_1 = arith.constant 0 : i32
    return %c0_i32, %c0_i32_0 : i32, i32
  }
  func.func @transform_6(%arg0: i32) -> (i32, i32) {
    %c0_i32 = arith.constant 0 : i32
    %c0_i32_0 = arith.constant 0 : i32
    %c0_i32_1 = arith.constant 0 : i32
    return %c0_i32, %c0_i32_0 : i32, i32
  }
  func.func @transform_7(%arg0: i32) -> (i32, i32) {
    %c0_i32 = arith.constant 0 : i32
    %c0_i32_0 = arith.constant 0 : i32
    return %arg0, %c0_i32 : i32, i32
  }
}

</mosaic_0001>

<llo_original>
// kernel: chessnet_forward.1
$region0: #{chessnet_forward.1}
  #allocation0 [shape = 'u32[]', space=smem, size = 0x4, offset = 0x4, fixed_abs, tag = 'smem constant byte address 0x4 - core index']
  #allocation1 [shape = 'u32[144,128]{1,0:T(1,128)}', space=vmem, size = 0x12000, scoped, tag = 'internal scratch']
  #allocation2 [shape = 'f32[1,1]{1,0:T(1,128)S(1)}', space=vmem, size = 0x200, scoped, tag = 'scoped memory for chessnet_forward.1']
  %s0 = inlined_call_operand.vmem [shape: f32[13,768], index: 0, kind: input, shape index: {}]
  %s1 = inlined_call_operand.vmem [shape: bf16[768,256], index: 1, kind: input, shape index: {}]
  %s2 = inlined_call_operand.vmem [shape: f32[1,256], index: 2, kind: input, shape index: {}]
  %s3 = inlined_call_operand.vmem [shape: bf16[256,128], index: 3, kind: input, shape index: {}]
  %s4 = inlined_call_operand.vmem [shape: f32[1,128], index: 4, kind: input, shape index: {}]
  %s5 = inlined_call_operand.vmem [shape: f32[1,128], index: 5, kind: input, shape index: {}]
  %s6 = inlined_call_operand.<no memory space> [shape: f32[1,1], index: 6, kind: input, shape index: {}]
  %s7 = inlined_call_operand.vmem [shape: f32[13,1], index: 7, kind: output, shape index: {}]
  %s8 = sld [smem:[#allocation0]]
  $region38: #{chessnet_forward.1} parent=0
    _
  %s10 = ssub.s32 1, %s8
  %s11 = scalar_select 0, %s10, %s8
  %v12 = vstv %s6
  %13 = vst [vmem:[#allocation2] sm:$0x1] %v12
  // Predicated region
  $region2: #{chessnet_forward.1} parent=0 // pred_check
    _
  $region3: #{chessnet_forward.1} parent=0 // pred_check_branch
    %15 = sbr.rel (0) target = $region5
  $region4: #{chessnet_forward.1} parent=0 // pred_region
    _
  $region5: #{chessnet_forward.1} parent=0 // pred_fallthru
    _
  // Predicated region
  $region6: #{chessnet_forward.1} parent=0 // pred_check
    _
  $region7: #{chessnet_forward.1} parent=0 // pred_check_branch
    %17 = sbr.rel (0) target = $region9
  $region8: #{chessnet_forward.1} parent=0 // pred_region
    _
  $region9: #{chessnet_forward.1} parent=0 // pred_fallthru
    _
  // Predicated region
  $region10: #{chessnet_forward.1} parent=0 // pred_check
    _
  $region11: #{chessnet_forward.1} parent=0 // pred_check_branch
    %19 = sbr.rel (0) target = $region13
  $region12: #{chessnet_forward.1} parent=0 // pred_region
    _
  $region13: #{chessnet_forward.1} parent=0 // pred_fallthru
    _
  // Predicated region
  $region14: #{chessnet_forward.1} parent=0 // pred_check
    _
  $region15: #{chessnet_forward.1} parent=0 // pred_check_branch
    %21 = sbr.rel (0) target = $region17
  $region16: #{chessnet_forward.1} parent=0 // pred_region
    _
  $region17: #{chessnet_forward.1} parent=0 // pred_fallthru
    _
  // Predicated region
  $region18: #{chessnet_forward.1} parent=0 // pred_check
    _
  $region19: #{chessnet_forward.1} parent=0 // pred_check_branch
    %23 = sbr.rel (0) target = $region21
  $region20: #{chessnet_forward.1} parent=0 // pred_region
    _
  $region21: #{chessnet_forward.1} parent=0 // pred_fallthru
    _
  // Predicated region
  $region22: #{chessnet_forward.1} parent=0 // pred_check
    _
  $region23: #{chessnet_forward.1} parent=0 // pred_check_branch
    %25 = sbr.rel (0) target = $region25
  $region24: #{chessnet_forward.1} parent=0 // pred_region
    _
  $region25: #{chessnet_forward.1} parent=0 // pred_fallthru
    _
  // Predicated region
  $region26: #{chessnet_forward.1} parent=0 // pred_check
    _
  $region27: #{chessnet_forward.1} parent=0 // pred_check_branch
    %27 = sbr.rel (0) target = $region29
  $region28: #{chessnet_forward.1} parent=0 // pred_region
    _
  $region29: #{chessnet_forward.1} parent=0 // pred_fallthru
    _
  %v29 = vld [vmem:[%s0] sm:$0xff]
  %v30 = vld [vmem:[%s0 + $0x8] sm:$0xff]
  %v31 = vld [vmem:[%s0 + $0x10] sm:$0xff]
  %v32 = vld [vmem:[%s0 + $0x18] sm:$0xff]
  %v33 = vld [vmem:[%s0 + $0x20] sm:$0xff]
  %v34 = vld [vmem:[%s0 + $0x28] sm:$0xff]
  %v35 = vld [vmem:[%s0 + $0x30] sm:$0xff]
  %v36 = vld [vmem:[%s0 + $0x38] sm:$0xff]
  %v37 = vld [vmem:[%s0 + $0x40] sm:$0xff]
  %v38 = vld [vmem:[%s0 + $0x48] sm:$0xff]
  %v39 = vld [vmem:[%s0 + $0x50] sm:$0xff]
  %v40 = vld [vmem:[%s0 + $0x58] sm:$0xff]
  %v41 = vpack.c.bf16 %v35, %v29
  %v42 = vpack.c.bf16 %v36, %v30
  %v43 = vpack.c.bf16 %v37, %v31
  %v44 = vpack.c.bf16 %v38, %v32
  %v45 = vpack.c.bf16 %v39, %v33
  %v46 = vpack.c.bf16 %v40, %v34
  %v47 = vld [vmem:[%s1] sm:$0xff]
  %v48 = vld [vmem:[%s1 + $0x8] sm:$0xff]
  %v49 = vld [vmem:[%s1 + $0x10] sm:$0xff]
  %v50 = vld [vmem:[%s1 + $0x18] sm:$0xff]
  %v51 = vld [vmem:[%s1 + $0x20] sm:$0xff]
  %v52 = vld [vmem:[%s1 + $0x28] sm:$0xff]
  %v53 = vld [vmem:[%s1 + $0x30] sm:$0xff]
  %v54 = vld [vmem:[%s1 + $0x38] sm:$0xff]
  %v55 = vld [vmem:[%s1 + $0x40] sm:$0xff]
  %v56 = vld [vmem:[%s1 + $0x48] sm:$0xff]
  %v57 = vld [vmem:[%s1 + $0x50] sm:$0xff]
  %v58 = vld [vmem:[%s1 + $0x58] sm:$0xff]
  %v59 = vld [vmem:[%s1 + $0x60] sm:$0xff]
  %v60 = vld [vmem:[%s1 + $0x68] sm:$0xff]
  %v61 = vld [vmem:[%s1 + $0x70] sm:$0xff]
  %v62 = vld [vmem:[%s1 + $0x78] sm:$0xff]
  %v63 = vld [vmem:[%s1 + $0x80] sm:$0xff]
  %v64 = vld [vmem:[%s1 + $0x88] sm:$0xff]
  %v65 = vld [vmem:[%s1 + $0x90] sm:$0xff]
  %v66 = vld [vmem:[%s1 + $0x98] sm:$0xff]
  %v67 = vld [vmem:[%s1 + $0xa0] sm:$0xff]
  %v68 = vld [vmem:[%s1 + $0xa8] sm:$0xff]
  %v69 = vld [vmem:[%s1 + $0xb0] sm:$0xff]
  %v70 = vld [vmem:[%s1 + $0xb8] sm:$0xff]
  %v71 = vld [vmem:[%s1 + $0xc0] sm:$0xff]
  %v72 = vld [vmem:[%s1 + $0xc8] sm:$0xff]
  %v73 = vld [vmem:[%s1 + $0xd0] sm:$0xff]
  %v74 = vld [vmem:[%s1 + $0xd8] sm:$0xff]
  %v75 = vld [vmem:[%s1 + $0xe0] sm:$0xff]
  %v76 = vld [vmem:[%s1 + $0xe8] sm:$0xff]
  %v77 = vld [vmem:[%s1 + $0xf0] sm:$0xff]
  %v78 = vld [vmem:[%s1 + $0xf8] sm:$0xff]
  %v79 = vld [vmem:[%s1 + $0x100] sm:$0xff]
  %v80 = vld [vmem:[%s1 + $0x108] sm:$0xff]
  %v81 = vld [vmem:[%s1 + $0x110] sm:$0xff]
  %v82 = vld [vmem:[%s1 + $0x118] sm:$0xff]
  %v83 = vld [vmem:[%s1 + $0x120] sm:$0xff]
  %v84 = vld [vmem:[%s1 + $0x128] sm:$0xff]
  %v85 = vld [vmem:[%s1 + $0x130] sm:$0xff]
  %v86 = vld [vmem:[%s1 + $0x138] sm:$0xff]
  %v87 = vld [vmem:[%s1 + $0x140] sm:$0xff]
  %v88 = vld [vmem:[%s1 + $0x148] sm:$0xff]
  %v89 = vld [vmem:[%s1 + $0x150] sm:$0xff]
  %v90 = vld [vmem:[%s1 + $0x158] sm:$0xff]
  %v91 = vld [vmem:[%s1 + $0x160] sm:$0xff]
  %v92 = vld [vmem:[%s1 + $0x168] sm:$0xff]
  %v93 = vld [vmem:[%s1 + $0x170] sm:$0xff]
  %v94 = vld [vmem:[%s1 + $0x178] sm:$0xff]
  %v95 = vld [vmem:[%s1 + $0x180] sm:$0xff]
  %v96 = vld [vmem:[%s1 + $0x188] sm:$0xff]
  %v97 = vld [vmem:[%s1 + $0x190] sm:$0xff]
  %v98 = vld [vmem:[%s1 + $0x198] sm:$0xff]
  %v99 = vld [vmem:[%s1 + $0x1a0] sm:$0xff]
  %v100 = vld [vmem:[%s1 + $0x1a8] sm:$0xff]
  %v101 = vld [vmem:[%s1 + $0x1b0] sm:$0xff]
  %v102 = vld [vmem:[%s1 + $0x1b8] sm:$0xff]
  %v103 = vld [vmem:[%s1 + $0x1c0] sm:$0xff]
  %v104 = vld [vmem:[%s1 + $0x1c8] sm:$0xff]
  %v105 = vld [vmem:[%s1 + $0x1d0] sm:$0xff]
  %v106 = vld [vmem:[%s1 + $0x1d8] sm:$0xff]
  %v107 = vld [vmem:[%s1 + $0x1e0] sm:$0xff]
  %v108 = vld [vmem:[%s1 + $0x1e8] sm:$0xff]
  %v109 = vld [vmem:[%s1 + $0x1f0] sm:$0xff]
  %v110 = vld [vmem:[%s1 + $0x1f8] sm:$0xff]
  %v111 = vld [vmem:[%s1 + $0x200] sm:$0xff]
  %v112 = vld [vmem:[%s1 + $0x208] sm:$0xff]
  %v113 = vld [vmem:[%s1 + $0x210] sm:$0xff]
  %v114 = vld [vmem:[%s1 + $0x218] sm:$0xff]
  %v115 = vld [vmem:[%s1 + $0x220] sm:$0xff]
  %v116 = vld [vmem:[%s1 + $0x228] sm:$0xff]
  %v117 = vld [vmem:[%s1 + $0x230] sm:$0xff]
  %v118 = vld [vmem:[%s1 + $0x238] sm:$0xff]
  %v119 = vld [vmem:[%s1 + $0x240] sm:$0xff]
  %v120 = vld [vmem:[%s1 + $0x248] sm:$0xff]
  %v121 = vld [vmem:[%s1 + $0x250] sm:$0xff]
  %v122 = vld [vmem:[%s1 + $0x258] sm:$0xff]
  %v123 = vld [vmem:[%s1 + $0x260] sm:$0xff]
  %v124 = vld [vmem:[%s1 + $0x268] sm:$0xff]
  %v125 = vld [vmem:[%s1 + $0x270] sm:$0xff]
  %v126 = vld [vmem:[%s1 + $0x278] sm:$0xff]
  %v127 = vld [vmem:[%s1 + $0x280] sm:$0xff]
  %v128 = vld [vmem:[%s1 + $0x288] sm:$0xff]
  %v129 = vld [vmem:[%s1 + $0x290] sm:$0xff]
  %v130 = vld [vmem:[%s1 + $0x298] sm:$0xff]
  %v131 = vld [vmem:[%s1 + $0x2a0] sm:$0xff]
  %v132 = vld [vmem:[%s1 + $0x2a8] sm:$0xff]
  %v133 = vld [vmem:[%s1 + $0x2b0] sm:$0xff]
  %v134 = vld [vmem:[%s1 + $0x2b8] sm:$0xff]
  %v135 = vld [vmem:[%s1 + $0x2c0] sm:$0xff]
  %v136 = vld [vmem:[%s1 + $0x2c8] sm:$0xff]
  %v137 = vld [vmem:[%s1 + $0x2d0] sm:$0xff]
  %v138 = vld [vmem:[%s1 + $0x2d8] sm:$0xff]
  %v139 = vld [vmem:[%s1 + $0x2e0] sm:$0xff]
  %v140 = vld [vmem:[%s1 + $0x2e8] sm:$0xff]
  %v141 = vld [vmem:[%s1 + $0x2f0] sm:$0xff]
  %v142 = vld [vmem:[%s1 + $0x2f8] sm:$0xff]
  %v143 = vld [vmem:[%s2] sm:$0x3]
  %v145 = vlaneseq
  %v146 = vshrl.u32 %v145, 7
  %v147 = vsub.s32 0, %v146
  %v148 = vrot.slane %v143, %v147
  %v149 = vlaneseq
  %v150 = vshrl.u32 %v149, 7
  %v151 = vsub.s32 1, %v150
  %v152 = vrot.slane %v143, %v151
  %v251 = vunpack.c.l.b16 %v47
  %v252 = vunpack.c.h.b16 %v47
  %v253 = vunpack.c.l.b16 %v48
  %v254 = vunpack.c.h.b16 %v48
  %v255 = vunpack.c.l.b16 %v49
  %v256 = vunpack.c.h.b16 %v49
  %v257 = vunpack.c.l.b16 %v50
  %v258 = vunpack.c.h.b16 %v50
  %v259 = vunpack.c.l.b16 %v51
  %v260 = vunpack.c.h.b16 %v51
  %v261 = vunpack.c.l.b16 %v52
  %v262 = vunpack.c.h.b16 %v52
  %v263 = vunpack.c.l.b16 %v53
  %v264 = vunpack.c.h.b16 %v53
  %v265 = vunpack.c.l.b16 %v54
  %v266 = vunpack.c.h.b16 %v54
  %v267 = vunpack.c.l.b16 %v55
  %v268 = vunpack.c.h.b16 %v55
  %v269 = vunpack.c.l.b16 %v56
  %v270 = vunpack.c.h.b16 %v56
  %v271 = vunpack.c.l.b16 %v57
  %v272 = vunpack.c.h.b16 %v57
  %v273 = vunpack.c.l.b16 %v58
  %v274 = vunpack.c.h.b16 %v58
  %v275 = vunpack.c.l.b16 %v59
  %v276 = vunpack.c.h.b16 %v59
  %v277 = vunpack.c.l.b16 %v60
  %v278 = vunpack.c.h.b16 %v60
  %v279 = vunpack.c.l.b16 %v61
  %v280 = vunpack.c.h.b16 %v61
  %v281 = vunpack.c.l.b16 %v62
  %v282 = vunpack.c.h.b16 %v62
  %v283 = vunpack.c.l.b16 %v63
  %v284 = vunpack.c.h.b16 %v63
  %v285 = vunpack.c.l.b16 %v64
  %v286 = vunpack.c.h.b16 %v64
  %v287 = vunpack.c.l.b16 %v65
  %v288 = vunpack.c.h.b16 %v65
  %v289 = vunpack.c.l.b16 %v66
  %v290 = vunpack.c.h.b16 %v66
  %v291 = vunpack.c.l.b16 %v67
  %v292 = vunpack.c.h.b16 %v67
  %v293 = vunpack.c.l.b16 %v68
  %v294 = vunpack.c.h.b16 %v68
  %v295 = vunpack.c.l.b16 %v69
  %v296 = vunpack.c.h.b16 %v69
  %v297 = vunpack.c.l.b16 %v70
  %v298 = vunpack.c.h.b16 %v70
  %v299 = vunpack.c.l.b16 %v71
  %v300 = vunpack.c.h.b16 %v71
  %v301 = vunpack.c.l.b16 %v72
  %v302 = vunpack.c.h.b16 %v72
  %v303 = vunpack.c.l.b16 %v73
  %v304 = vunpack.c.h.b16 %v73
  %v305 = vunpack.c.l.b16 %v74
  %v306 = vunpack.c.h.b16 %v74
  %v307 = vunpack.c.l.b16 %v75
  %v308 = vunpack.c.h.b16 %v75
  %v309 = vunpack.c.l.b16 %v76
  %v310 = vunpack.c.h.b16 %v76
  %v311 = vunpack.c.l.b16 %v77
  %v312 = vunpack.c.h.b16 %v77
  %v313 = vunpack.c.l.b16 %v78
  %v314 = vunpack.c.h.b16 %v78
  %v315 = vunpack.c.l.b16 %v79
  %v316 = vunpack.c.h.b16 %v79
  %v317 = vunpack.c.l.b16 %v80
  %v318 = vunpack.c.h.b16 %v80
  %v319 = vunpack.c.l.b16 %v81
  %v320 = vunpack.c.h.b16 %v81
  %v321 = vunpack.c.l.b16 %v82
  %v322 = vunpack.c.h.b16 %v82
  %v323 = vunpack.c.l.b16 %v83
  %v324 = vunpack.c.h.b16 %v83
  %v325 = vunpack.c.l.b16 %v84
  %v326 = vunpack.c.h.b16 %v84
  %v327 = vunpack.c.l.b16 %v85
  %v328 = vunpack.c.h.b16 %v85
  %v329 = vunpack.c.l.b16 %v86
  %v330 = vunpack.c.h.b16 %v86
  %v331 = vunpack.c.l.b16 %v87
  %v332 = vunpack.c.h.b16 %v87
  %v333 = vunpack.c.l.b16 %v88
  %v334 = vunpack.c.h.b16 %v88
  %v335 = vunpack.c.l.b16 %v89
  %v336 = vunpack.c.h.b16 %v89
  %v337 = vunpack.c.l.b16 %v90
  %v338 = vunpack.c.h.b16 %v90
  %v339 = vunpack.c.l.b16 %v91
  %v340 = vunpack.c.h.b16 %v91
  %v341 = vunpack.c.l.b16 %v92
  %v342 = vunpack.c.h.b16 %v92
  %v343 = vunpack.c.l.b16 %v93
  %v344 = vunpack.c.h.b16 %v93
  %v345 = vunpack.c.l.b16 %v94
  %v346 = vunpack.c.h.b16 %v94
  %v347 = vunpack.c.l.b16 %v95
  %v348 = vunpack.c.h.b16 %v95
  %v349 = vunpack.c.l.b16 %v96
  %v350 = vunpack.c.h.b16 %v96
  %v351 = vunpack.c.l.b16 %v97
  %v352 = vunpack.c.h.b16 %v97
  %v353 = vunpack.c.l.b16 %v98
  %v354 = vunpack.c.h.b16 %v98
  %v355 = vunpack.c.l.b16 %v99
  %v356 = vunpack.c.h.b16 %v99
  %v357 = vunpack.c.l.b16 %v100
  %v358 = vunpack.c.h.b16 %v100
  %v359 = vunpack.c.l.b16 %v101
  %v360 = vunpack.c.h.b16 %v101
  %v361 = vunpack.c.l.b16 %v102
  %v362 = vunpack.c.h.b16 %v102
  %v363 = vunpack.c.l.b16 %v103
  %v364 = vunpack.c.h.b16 %v103
  %v365 = vunpack.c.l.b16 %v104
  %v366 = vunpack.c.h.b16 %v104
  %v367 = vunpack.c.l.b16 %v105
  %v368 = vunpack.c.h.b16 %v105
  %v369 = vunpack.c.l.b16 %v106
  %v370 = vunpack.c.h.b16 %v106
  %v371 = vunpack.c.l.b16 %v107
  %v372 = vunpack.c.h.b16 %v107
  %v373 = vunpack.c.l.b16 %v108
  %v374 = vunpack.c.h.b16 %v108
  %v375 = vunpack.c.l.b16 %v109
  %v376 = vunpack.c.h.b16 %v109
  %v377 = vunpack.c.l.b16 %v110
  %v378 = vunpack.c.h.b16 %v110
  %v379 = vunpack.c.l.b16 %v111
  %v380 = vunpack.c.h.b16 %v111
  %v381 = vunpack.c.l.b16 %v112
  %v382 = vunpack.c.h.b16 %v112
  %v383 = vunpack.c.l.b16 %v113
  %v384 = vunpack.c.h.b16 %v113
  %v385 = vunpack.c.l.b16 %v114
  %v386 = vunpack.c.h.b16 %v114
  %v387 = vunpack.c.l.b16 %v115
  %v388 = vunpack.c.h.b16 %v115
  %v389 = vunpack.c.l.b16 %v116
  %v390 = vunpack.c.h.b16 %v116
  %v391 = vunpack.c.l.b16 %v117
  %v392 = vunpack.c.h.b16 %v117
  %v393 = vunpack.c.l.b16 %v118
  %v394 = vunpack.c.h.b16 %v118
  %v395 = vunpack.c.l.b16 %v119
  %v396 = vunpack.c.h.b16 %v119
  %v397 = vunpack.c.l.b16 %v120
  %v398 = vunpack.c.h.b16 %v120
  %v399 = vunpack.c.l.b16 %v121
  %v400 = vunpack.c.h.b16 %v121
  %v401 = vunpack.c.l.b16 %v122
  %v402 = vunpack.c.h.b16 %v122
  %v403 = vunpack.c.l.b16 %v123
  %v404 = vunpack.c.h.b16 %v123
  %v405 = vunpack.c.l.b16 %v124
  %v406 = vunpack.c.h.b16 %v124
  %v407 = vunpack.c.l.b16 %v125
  %v408 = vunpack.c.h.b16 %v125
  %v409 = vunpack.c.l.b16 %v126
  %v410 = vunpack.c.h.b16 %v126
  %v411 = vunpack.c.l.b16 %v127
  %v412 = vunpack.c.h.b16 %v127
  %v413 = vunpack.c.l.b16 %v128
  %v414 = vunpack.c.h.b16 %v128
  %v415 = vunpack.c.l.b16 %v129
  %v416 = vunpack.c.h.b16 %v129
  %v417 = vunpack.c.l.b16 %v130
  %v418 = vunpack.c.h.b16 %v130
  %v419 = vunpack.c.l.b16 %v131
  %v420 = vunpack.c.h.b16 %v131
  %v421 = vunpack.c.l.b16 %v132
  %v422 = vunpack.c.h.b16 %v132
  %v423 = vunpack.c.l.b16 %v133
  %v424 = vunpack.c.h.b16 %v133
  %v425 = vunpack.c.l.b16 %v134
  %v426 = vunpack.c.h.b16 %v134
  %v427 = vunpack.c.l.b16 %v135
  %v428 = vunpack.c.h.b16 %v135
  %v429 = vunpack.c.l.b16 %v136
  %v430 = vunpack.c.h.b16 %v136
  %v431 = vunpack.c.l.b16 %v137
  %v432 = vunpack.c.h.b16 %v137
  %v433 = vunpack.c.l.b16 %v138
  %v434 = vunpack.c.h.b16 %v138
  %v435 = vunpack.c.l.b16 %v139
  %v436 = vunpack.c.h.b16 %v139
  %v437 = vunpack.c.l.b16 %v140
  %v438 = vunpack.c.h.b16 %v140
  %v439 = vunpack.c.l.b16 %v141
  %v440 = vunpack.c.h.b16 %v141
  %v441 = vunpack.c.l.b16 %v142
  %v442 = vunpack.c.h.b16 %v142
  %v443 = vpack.c.b16 %v253, %v251
  %v444 = vpack.c.b16 %v254, %v252
  %v445 = vpack.c.b16 %v257, %v255
  %v446 = vpack.c.b16 %v258, %v256
  %v447 = vpack.c.b16 %v261, %v259
  %v448 = vpack.c.b16 %v262, %v260
  %v449 = vpack.c.b16 %v265, %v263
  %v450 = vpack.c.b16 %v266, %v264
  %v451 = vpack.c.b16 %v269, %v267
  %v452 = vpack.c.b16 %v270, %v268
  %v453 = vpack.c.b16 %v273, %v271
  %v454 = vpack.c.b16 %v274, %v272
  %v455 = vpack.c.b16 %v277, %v275
  %v456 = vpack.c.b16 %v278, %v276
  %v457 = vpack.c.b16 %v281, %v279
  %v458 = vpack.c.b16 %v282, %v280
  %v459 = vpack.c.b16 %v285, %v283
  %v460 = vpack.c.b16 %v286, %v284
  %v461 = vpack.c.b16 %v289, %v287
  %v462 = vpack.c.b16 %v290, %v288
  %v463 = vpack.c.b16 %v293, %v291
  %v464 = vpack.c.b16 %v294, %v292
  %v465 = vpack.c.b16 %v297, %v295
  %v466 = vpack.c.b16 %v298, %v296
  %v467 = vpack.c.b16 %v301, %v299
  %v468 = vpack.c.b16 %v302, %v300
  %v469 = vpack.c.b16 %v305, %v303
  %v470 = vpack.c.b16 %v306, %v304
  %v471 = vpack.c.b16 %v309, %v307
  %v472 = vpack.c.b16 %v310, %v308
  %v473 = vpack.c.b16 %v313, %v311
  %v474 = vpack.c.b16 %v314, %v312
  %v475 = vpack.c.b16 %v317, %v315
  %v476 = vpack.c.b16 %v318, %v316
  %v477 = vpack.c.b16 %v321, %v319
  %v478 = vpack.c.b16 %v322, %v320
  %v479 = vpack.c.b16 %v325, %v323
  %v480 = vpack.c.b16 %v326, %v324
  %v481 = vpack.c.b16 %v329, %v327
  %v482 = vpack.c.b16 %v330, %v328
  %v483 = vpack.c.b16 %v333, %v331
  %v484 = vpack.c.b16 %v334, %v332
  %v485 = vpack.c.b16 %v337, %v335
  %v486 = vpack.c.b16 %v338, %v336
  %v487 = vpack.c.b16 %v341, %v339
  %v488 = vpack.c.b16 %v342, %v340
  %v489 = vpack.c.b16 %v345, %v343
  %v490 = vpack.c.b16 %v346, %v344
  %v491 = vpack.c.b16 %v349, %v347
  %v492 = vpack.c.b16 %v350, %v348
  %v493 = vpack.c.b16 %v353, %v351
  %v494 = vpack.c.b16 %v354, %v352
  %v495 = vpack.c.b16 %v357, %v355
  %v496 = vpack.c.b16 %v358, %v356
  %v497 = vpack.c.b16 %v361, %v359
  %v498 = vpack.c.b16 %v362, %v360
  %v499 = vpack.c.b16 %v365, %v363
  %v500 = vpack.c.b16 %v366, %v364
  %v501 = vpack.c.b16 %v369, %v367
  %v502 = vpack.c.b16 %v370, %v368
  %v503 = vpack.c.b16 %v373, %v371
  %v504 = vpack.c.b16 %v374, %v372
  %v505 = vpack.c.b16 %v377, %v375
  %v506 = vpack.c.b16 %v378, %v376
  %v507 = vpack.c.b16 %v381, %v379
  %v508 = vpack.c.b16 %v382, %v380
  %v509 = vpack.c.b16 %v385, %v383
  %v510 = vpack.c.b16 %v386, %v384
  %v511 = vpack.c.b16 %v389, %v387
  %v512 = vpack.c.b16 %v390, %v388
  %v513 = vpack.c.b16 %v393, %v391
  %v514 = vpack.c.b16 %v394, %v392
  %v515 = vpack.c.b16 %v397, %v395
  %v516 = vpack.c.b16 %v398, %v396
  %v517 = vpack.c.b16 %v401, %v399
  %v518 = vpack.c.b16 %v402, %v400
  %v519 = vpack.c.b16 %v405, %v403
  %v520 = vpack.c.b16 %v406, %v404
  %v521 = vpack.c.b16 %v409, %v407
  %v522 = vpack.c.b16 %v410, %v408
  %v523 = vpack.c.b16 %v413, %v411
  %v524 = vpack.c.b16 %v414, %v412
  %v525 = vpack.c.b16 %v417, %v415
  %v526 = vpack.c.b16 %v418, %v416
  %v527 = vpack.c.b16 %v421, %v419
  %v528 = vpack.c.b16 %v422, %v420
  %v529 = vpack.c.b16 %v425, %v423
  %v530 = vpack.c.b16 %v426, %v424
  %v531 = vpack.c.b16 %v429, %v427
  %v532 = vpack.c.b16 %v430, %v428
  %v533 = vpack.c.b16 %v433, %v431
  %v534 = vpack.c.b16 %v434, %v432
  %v535 = vpack.c.b16 %v437, %v435
  %v536 = vpack.c.b16 %v438, %v436
  %v537 = vpack.c.b16 %v441, %v439
  %v538 = vpack.c.b16 %v442, %v440
  %635 = vmatprep.subr.bf16.mxu0 %v458
  %636 = vmatpush1.bf16.msra.mxu0 %v457
  %637 = vmatprep.subr.bf16.mxu0 %v456
  %638 = vmatpush1.bf16.msra.mxu0 %v455
  %639 = vmatprep.subr.bf16.mxu0 %v454
  %640 = vmatpush1.bf16.msra.mxu0 %v453
  %641 = vmatprep.subr.bf16.mxu0 %v452
  %642 = vmatpush1.bf16.msra.mxu0 %v451
  %643 = vmatprep.subr.bf16.mxu0 %v450
  %644 = vmatpush1.bf16.msra.mxu0 %v449
  %645 = vmatprep.subr.bf16.mxu0 %v448
  %646 = vmatpush1.bf16.msra.mxu0 %v447
  %647 = vmatprep.subr.bf16.mxu0 %v446
  %648 = vmatpush1.bf16.msra.mxu0 %v445
  %649 = vmatprep.subr.bf16.mxu0 %v444
  %650 = vmatpush1.bf16.msra.mxu0 %v443
  %651 = vmatprep.subr.bf16.mxu0 %v474
  %652 = vmatpush2.bf16.msra.mxu0 %v473
  %653 = vmatprep.subr.bf16.mxu0 %v472
  %654 = vmatpush2.bf16.msra.mxu0 %v471
  %655 = vmatprep.subr.bf16.mxu0 %v470
  %656 = vmatpush2.bf16.msra.mxu0 %v469
  %657 = vmatprep.subr.bf16.mxu0 %v468
  %658 = vmatpush2.bf16.msra.mxu0 %v467
  %659 = vmatprep.subr.bf16.mxu0 %v466
  %660 = vmatpush2.bf16.msra.mxu0 %v465
  %661 = vmatprep.subr.bf16.mxu0 %v464
  %662 = vmatpush2.bf16.msra.mxu0 %v463
  %663 = vmatprep.subr.bf16.mxu0 %v462
  %664 = vmatpush2.bf16.msra.mxu0 %v461
  %665 = vmatprep.subr.bf16.mxu0 %v460
  %666 = vmatpush2.bf16.msra.mxu0 %v459
  %667 = vmatprep.mubr.bf16.mxu0 %v42
  %668 = vmatmul.mubr.bf16.gmra.mxu0 %v41
  %v669 = vpop.f32.mrf.mxu0
  %v670 = vadd.f32 %v148, %v669
  %v671 = vpop.f32.mrf.mxu0
  %v672 = vadd.f32 %v152, %v671
  %v673 = vpop.f32.mrf.mxu0
  %v674 = vadd.f32 %v148, %v673
  %v675 = vpop.f32.mrf.mxu0
  %v676 = vadd.f32 %v152, %v675
  %677 = vdwg.mxu0
  %678 = vmatprep.subr.bf16.mxu0 %v490
  %679 = vmatpush1.bf16.msra.mxu0 %v489
  %680 = vmatprep.subr.bf16.mxu0 %v488
  %681 = vmatpush1.bf16.msra.mxu0 %v487
  %682 = vmatprep.subr.bf16.mxu0 %v486
  %683 = vmatpush1.bf16.msra.mxu0 %v485
  %684 = vmatprep.subr.bf16.mxu0 %v484
  %685 = vmatpush1.bf16.msra.mxu0 %v483
  %686 = vmatprep.subr.bf16.mxu0 %v482
  %687 = vmatpush1.bf16.msra.mxu0 %v481
  %688 = vmatprep.subr.bf16.mxu0 %v480
  %689 = vmatpush1.bf16.msra.mxu0 %v479
  %690 = vmatprep.subr.bf16.mxu0 %v478
  %691 = vmatpush1.bf16.msra.mxu0 %v477
  %692 = vmatprep.subr.bf16.mxu0 %v476
  %693 = vmatpush1.bf16.msra.mxu0 %v475
  %694 = vmatprep.subr.bf16.mxu0 %v506
  %695 = vmatpush2.bf16.msra.mxu0 %v505
  %696 = vmatprep.subr.bf16.mxu0 %v504
  %697 = vmatpush2.bf16.msra.mxu0 %v503
  %698 = vmatprep.subr.bf16.mxu0 %v502
  %699 = vmatpush2.bf16.msra.mxu0 %v501
  %700 = vmatprep.subr.bf16.mxu0 %v500
  %701 = vmatpush2.bf16.msra.mxu0 %v499
  %702 = vmatprep.subr.bf16.mxu0 %v498
  %703 = vmatpush2.bf16.msra.mxu0 %v497
  %704 = vmatprep.subr.bf16.mxu0 %v496
  %705 = vmatpush2.bf16.msra.mxu0 %v495
  %706 = vmatprep.subr.bf16.mxu0 %v494
  %707 = vmatpush2.bf16.msra.mxu0 %v493
  %708 = vmatprep.subr.bf16.mxu0 %v492
  %709 = vmatpush2.bf16.msra.mxu0 %v491
  %710 = vmatprep.mubr.bf16.mxu0 %v44
  %711 = vmatmul.mubr.bf16.gmra.mxu0 %v43
  %v712 = vpop.f32.mrf.mxu0
  %v713 = vadd.f32 %v670, %v712
  %v714 = vpop.f32.mrf.mxu0
  %v715 = vadd.f32 %v672, %v714
  %v716 = vpop.f32.mrf.mxu0
  %v717 = vadd.f32 %v674, %v716
  %v718 = vpop.f32.mrf.mxu0
  %v719 = vadd.f32 %v676, %v718
  %720 = vdwg.mxu0
  %721 = vmatprep.subr.bf16.mxu0 %v522
  %722 = vmatpush1.bf16.msra.mxu0 %v521
  %723 = vmatprep.subr.bf16.mxu0 %v520
  %724 = vmatpush1.bf16.msra.mxu0 %v519
  %725 = vmatprep.subr.bf16.mxu0 %v518
  %726 = vmatpush1.bf16.msra.mxu0 %v517
  %727 = vmatprep.subr.bf16.mxu0 %v516
  %728 = vmatpush1.bf16.msra.mxu0 %v515
  %729 = vmatprep.subr.bf16.mxu0 %v514
  %730 = vmatpush1.bf16.msra.mxu0 %v513
  %731 = vmatprep.subr.bf16.mxu0 %v512
  %732 = vmatpush1.bf16.msra.mxu0 %v511
  %733 = vmatprep.subr.bf16.mxu0 %v510
  %734 = vmatpush1.bf16.msra.mxu0 %v509
  %735 = vmatprep.subr.bf16.mxu0 %v508
  %736 = vmatpush1.bf16.msra.mxu0 %v507
  %737 = vmatprep.subr.bf16.mxu0 %v538
  %738 = vmatpush2.bf16.msra.mxu0 %v537
  %739 = vmatprep.subr.bf16.mxu0 %v536
  %740 = vmatpush2.bf16.msra.mxu0 %v535
  %741 = vmatprep.subr.bf16.mxu0 %v534
  %742 = vmatpush2.bf16.msra.mxu0 %v533
  %743 = vmatprep.subr.bf16.mxu0 %v532
  %744 = vmatpush2.bf16.msra.mxu0 %v531
  %745 = vmatprep.subr.bf16.mxu0 %v530
  %746 = vmatpush2.bf16.msra.mxu0 %v529
  %747 = vmatprep.subr.bf16.mxu0 %v528
  %748 = vmatpush2.bf16.msra.mxu0 %v527
  %749 = vmatprep.subr.bf16.mxu0 %v526
  %750 = vmatpush2.bf16.msra.mxu0 %v525
  %751 = vmatprep.subr.bf16.mxu0 %v524
  %752 = vmatpush2.bf16.msra.mxu0 %v523
  %753 = vmatprep.mubr.bf16.mxu0 %v46
  %754 = vmatmul.mubr.bf16.gmra.mxu0 %v45
  %v755 = vpop.f32.mrf.mxu0
  %v756 = vadd.f32 %v713, %v755
  %v757 = vpop.f32.mrf.mxu0
  %v758 = vadd.f32 %v715, %v757
  %v759 = vpop.f32.mrf.mxu0
  %v760 = vadd.f32 %v717, %v759
  %v761 = vpop.f32.mrf.mxu0
  %v762 = vadd.f32 %v719, %v761
  %763 = vdwg.mxu0
  %v764 = vmax.f32 %v756, 0.0
  %v765 = vmax.f32 %v758, 0.0
  %v766 = vmax.f32 %v760, 0.0
  %v767 = vmax.f32 %v762, 0.0
  %v768 = vpack.c.bf16 %v766, %v764
  %v769 = vpack.c.bf16 %v767, %v765
  %v770 = vld [vmem:[%s3] sm:$0xf]
  %v771 = vld [vmem:[%s3 + $0x4] sm:$0xf]
  %v772 = vld [vmem:[%s3 + $0x8] sm:$0xf]
  %v773 = vld [vmem:[%s3 + $0xc] sm:$0xf]
  %v774 = vld [vmem:[%s3 + $0x10] sm:$0xf]
  %v775 = vld [vmem:[%s3 + $0x14] sm:$0xf]
  %v776 = vld [vmem:[%s3 + $0x18] sm:$0xf]
  %v777 = vld [vmem:[%s3 + $0x1c] sm:$0xf]
  %v778 = vld [vmem:[%s3 + $0x20] sm:$0xf]
  %v779 = vld [vmem:[%s3 + $0x24] sm:$0xf]
  %v780 = vld [vmem:[%s3 + $0x28] sm:$0xf]
  %v781 = vld [vmem:[%s3 + $0x2c] sm:$0xf]
  %v782 = vld [vmem:[%s3 + $0x30] sm:$0xf]
  %v783 = vld [vmem:[%s3 + $0x34] sm:$0xf]
  %v784 = vld [vmem:[%s3 + $0x38] sm:$0xf]
  %v785 = vld [vmem:[%s3 + $0x3c] sm:$0xf]
  %v786 = vld [vmem:[%s3 + $0x40] sm:$0xf]
  %v787 = vld [vmem:[%s3 + $0x44] sm:$0xf]
  %v788 = vld [vmem:[%s3 + $0x48] sm:$0xf]
  %v789 = vld [vmem:[%s3 + $0x4c] sm:$0xf]
  %v790 = vld [vmem:[%s3 + $0x50] sm:$0xf]
  %v791 = vld [vmem:[%s3 + $0x54] sm:$0xf]
  %v792 = vld [vmem:[%s3 + $0x58] sm:$0xf]
  %v793 = vld [vmem:[%s3 + $0x5c] sm:$0xf]
  %v794 = vld [vmem:[%s3 + $0x60] sm:$0xf]
  %v795 = vld [vmem:[%s3 + $0x64] sm:$0xf]
  %v796 = vld [vmem:[%s3 + $0x68] sm:$0xf]
  %v797 = vld [vmem:[%s3 + $0x6c] sm:$0xf]
  %v798 = vld [vmem:[%s3 + $0x70] sm:$0xf]
  %v799 = vld [vmem:[%s3 + $0x74] sm:$0xf]
  %v800 = vld [vmem:[%s3 + $0x78] sm:$0xf]
  %v801 = vld [vmem:[%s3 + $0x7c] sm:$0xf]
  %v802 = vld [vmem:[%s4] sm:$0x1]
  %v804 = vlaneseq
  %v805 = vshrl.u32 %v804, 7
  %v806 = vsub.s32 0, %v805
  %v807 = vrot.slane %v802, %v806
  %v841 = vunpack.c.l.b16 %v770
  %v842 = vunpack.c.l.b16 %v771
  %v843 = vunpack.c.l.b16 %v772
  %v844 = vunpack.c.l.b16 %v773
  %v845 = vunpack.c.l.b16 %v774
  %v846 = vunpack.c.l.b16 %v775
  %v847 = vunpack.c.l.b16 %v776
  %v848 = vunpack.c.l.b16 %v777
  %v849 = vunpack.c.l.b16 %v778
  %v850 = vunpack.c.l.b16 %v779
  %v851 = vunpack.c.l.b16 %v780
  %v852 = vunpack.c.l.b16 %v781
  %v853 = vunpack.c.l.b16 %v782
  %v854 = vunpack.c.l.b16 %v783
  %v855 = vunpack.c.l.b16 %v784
  %v856 = vunpack.c.l.b16 %v785
  %v857 = vunpack.c.l.b16 %v786
  %v858 = vunpack.c.l.b16 %v787
  %v859 = vunpack.c.l.b16 %v788
  %v860 = vunpack.c.l.b16 %v789
  %v861 = vunpack.c.l.b16 %v790
  %v862 = vunpack.c.l.b16 %v791
  %v863 = vunpack.c.l.b16 %v792
  %v864 = vunpack.c.l.b16 %v793
  %v865 = vunpack.c.l.b16 %v794
  %v866 = vunpack.c.l.b16 %v795
  %v867 = vunpack.c.l.b16 %v796
  %v868 = vunpack.c.l.b16 %v797
  %v869 = vunpack.c.l.b16 %v798
  %v870 = vunpack.c.l.b16 %v799
  %v871 = vunpack.c.l.b16 %v800
  %v872 = vunpack.c.l.b16 %v801
  %v873 = vpack.c.b16 %v842, %v841
  %v874 = vpack.c.b16 %v844, %v843
  %v875 = vpack.c.b16 %v846, %v845
  %v876 = vpack.c.b16 %v848, %v847
  %v877 = vpack.c.b16 %v850, %v849
  %v878 = vpack.c.b16 %v852, %v851
  %v879 = vpack.c.b16 %v854, %v853
  %v880 = vpack.c.b16 %v856, %v855
  %v881 = vpack.c.b16 %v858, %v857
  %v882 = vpack.c.b16 %v860, %v859
  %v883 = vpack.c.b16 %v862, %v861
  %v884 = vpack.c.b16 %v864, %v863
  %v885 = vpack.c.b16 %v866, %v865
  %v886 = vpack.c.b16 %v868, %v867
  %v887 = vpack.c.b16 %v870, %v869
  %v888 = vpack.c.b16 %v872, %v871
  %905 = vmatprep.subr.bf16.mxu0 0
  %906 = vmatpush1.bf16.msra.mxu0 %v880
  %907 = vmatprep.subr.bf16.mxu0 0
  %908 = vmatpush1.bf16.msra.mxu0 %v879
  %909 = vmatprep.subr.bf16.mxu0 0
  %910 = vmatpush1.bf16.msra.mxu0 %v878
  %911 = vmatprep.subr.bf16.mxu0 0
  %912 = vmatpush1.bf16.msra.mxu0 %v877
  %913 = vmatprep.subr.bf16.mxu0 0
  %914 = vmatpush1.bf16.msra.mxu0 %v876
  %915 = vmatprep.subr.bf16.mxu0 0
  %916 = vmatpush1.bf16.msra.mxu0 %v875
  %917 = vmatprep.subr.bf16.mxu0 0
  %918 = vmatpush1.bf16.msra.mxu0 %v874
  %919 = vmatprep.subr.bf16.mxu0 0
  %920 = vmatpush1.bf16.msra.mxu0 %v873
  %921 = vmatprep.subr.bf16.mxu0 0
  %922 = vmatpush2.bf16.msra.mxu0 %v888
  %923 = vmatprep.subr.bf16.mxu0 0
  %924 = vmatpush2.bf16.msra.mxu0 %v887
  %925 = vmatprep.subr.bf16.mxu0 0
  %926 = vmatpush2.bf16.msra.mxu0 %v886
  %927 = vmatprep.subr.bf16.mxu0 0
  %928 = vmatpush2.bf16.msra.mxu0 %v885
  %929 = vmatprep.subr.bf16.mxu0 0
  %930 = vmatpush2.bf16.msra.mxu0 %v884
  %931 = vmatprep.subr.bf16.mxu0 0
  %932 = vmatpush2.bf16.msra.mxu0 %v883
  %933 = vmatprep.subr.bf16.mxu0 0
  %934 = vmatpush2.bf16.msra.mxu0 %v882
  %935 = vmatprep.subr.bf16.mxu0 0
  %936 = vmatpush2.bf16.msra.mxu0 %v881
  %937 = vmatprep.mubr.bf16.mxu0 %v769
  %938 = vmatmul.mubr.bf16.gmra.mxu0 %v768
  %v939 = vpop.f32.mrf.mxu0
  %v940 = vadd.f32 %v807, %v939
  %v941 = vpop.f32.mrf.mxu0
  %v942 = vpop.f32.mrf.mxu0
  %v943 = vadd.f32 %v807, %v942
  %v944 = vpop.f32.mrf.mxu0
  %945 = vdwg.mxu0
  %v946 = vmax.f32 %v940, 0.0
  %v947 = vmax.f32 %v943, 0.0
  %v948 = vld [vmem:[%s5] sm:$0x1]
  %v950 = vlaneseq
  %v951 = vshrl.u32 %v950, 7
  %v952 = vsub.s32 0, %v951
  %v953 = vrot.slane %v948, %v952
  %v955 = vmul.f32 %v946, %v953
  %v956 = vmul.f32 %v947, %v953
  %957 = vadd.xlane.f32.xlu0 %v955
  %v958 = vpop.xlane.xlu0 %957
  %959 = vadd.xlane.f32.xlu0 %v956
  %v960 = vpop.xlane.xlu0 %959
  %v961 = vld [vmem:[#allocation2] sm:$0x1]
  %v963 = vlaneseq
  %v964 = vshrl.u32 %v963, 7
  %v965 = vsub.s32 0, %v964
  %v966 = vrot.slane %v961, %v965
  %v968 = vadd.f32 %v958, %v966
  %v969 = vadd.f32 %v960, %v966
  %v970 = vtanh.pop %v968
  %v971 = vtanh.pop %v969
  %vm972 = vcmask 7168
  %973 = vst.msk [vmem:[%s7] sm:$0xff] %vm972, %v970
  %974 = vst.msk [vmem:[%s7 + $0x8] sm:$0xff] %vm972, %v971
  // Predicated region
  $region30: #{chessnet_forward.1} parent=0 // pred_check
    _
  $region31: #{chessnet_forward.1} parent=0 // pred_check_branch
    %976 = sbr.rel (0) target = $region33
  $region32: #{chessnet_forward.1} parent=0 // pred_region
    _
  $region33: #{chessnet_forward.1} parent=0 // pred_fallthru
    _
  // Predicated region
  $region34: #{chessnet_forward.1} parent=0 // pred_check
    _
  $region35: #{chessnet_forward.1} parent=0 // pred_check_branch
    %978 = sbr.rel (0) target = $region37
  $region36: #{chessnet_forward.1} parent=0 // pred_region
    _
  $region37: #{chessnet_forward.1} parent=0 // pred_fallthru
    _

</llo_original>
